<compile_context>
chip_gen: v7x
topology: tpu7x:2x2x1
jax: 0.10.0
libtpu: 0.0.40
codegen_flags: <defaults>
</compile_context>

<pallas_src>
import jax
import jax.numpy as jnp
import numpy as np
from jax.experimental import pallas as pl
from jax.experimental.pallas import tpu as pltpu


def _harmony_rnn_kernel(x_ref, w_ih_t_ref, w_hh_t_ref, b_rnn_ref,
                        w_fc_t_ref, b_fc_ref, out_ref, hs_ref):
    """Whole-sequence HarmonyRNN forward in one kernel invocation.

    x_ref    : (T*B, N)   time-major flattened piano-roll input (row = t*B+b)
    w_ih_t   : (N, H)     input->hidden weight, pre-transposed
    w_hh_t   : (H, H)     hidden->hidden weight, pre-transposed
    b_rnn    : (1, H)     b_ih + b_hh pre-folded
    w_fc_t   : (H, N)     fc weight, pre-transposed
    b_fc     : (1, N)
    out_ref  : (B*T, N)   fc logits, batch-major rows (row = b*T + t)
    hs_ref   : (B, T, H)  VMEM scratch holding all hidden states
    """
    B, T, H = hs_ref.shape

    w_hh_t = w_hh_t_ref[...]

    # Hoisted input projection: one (T*B, N) @ (N, H) MXU push, bias folded in.
    # Time-major rows: row t*B + b.
    xw = (
        jnp.dot(x_ref[...], w_ih_t_ref[...],
                preferred_element_type=jnp.float32)
        + b_rnn_ref[...]
    )

    # Recurrence: fully unrolled over the static, small time axis.  Each step
    # reads a *contiguous* static (B, H) block of xw (no strided selects on
    # the serial chain) and writes its hidden state into the batch-major
    # scratch (off the h->h chain).
    # For large T, switch this to lax.fori_loop(..., unroll=k) to bound
    # vreg live ranges.
    h = jnp.zeros((B, H), jnp.float32)
    for t in range(T):
        xw_t = xw[t * B:(t + 1) * B, :]                    # contiguous block
        h = jnp.tanh(
            xw_t + jnp.dot(h, w_hh_t, preferred_element_type=jnp.float32)
        )
        hs_ref[:, t, :] = h                                # static-index store

    # (B, T, H) -> (B*T, H): leading-dim collapse, batch-major rows b*T + t,
    # matching torch's fc(ys).reshape(-1, N) ordering.
    hs_all = hs_ref[...].reshape(B * T, H)

    # Hoisted fc: one (B*T, H) @ (H, N) matmul and one store.
    out_ref[...] = (
        jnp.dot(hs_all, w_fc_t_ref[...], preferred_element_type=jnp.float32)
        + b_fc_ref[...]
    ).astype(out_ref.dtype)


@jax.jit
def harmony_rnn_forward(prbt, params):
    """prbt: (B, T, N) float32 piano-roll batch (batch_first, like PyTorch).

    Returns logits of shape (B*T, N), matching
    `self.fc(self.rnn(prbt)[0]).reshape(-1, n_note_class)`.
    """
    B, T, N = prbt.shape
    H = params["w_hh"].shape[0]

    # Wrapper glue (all tiny, fused XLA ops): time-major flatten of the input,
    # pre-transposed weights, both RNN biases folded into one, 2-D biases.
    x_tm = jnp.transpose(prbt, (1, 0, 2)).reshape(T * B, N)   # (T*B, N)
    w_ih_t = params["w_ih"].T                                 # (N, H)
    w_hh_t = params["w_hh"].T                                 # (H, H)
    b_rnn = (params["b_ih"] + params["b_hh"]).reshape(1, H)   # (1, H)
    w_fc_t = params["w_fc"].T                                 # (H, N)
    b_fc = params["b_fc"].reshape(1, N)                       # (1, N)

    # Advisory cost hint for the XLA scheduler around the custom call.
    flops = 2 * B * T * N * H + 2 * T * B * H * H + 2 * B * T * H * N
    bytes_accessed = 4 * (T * B * N + N * H + H * H + H + H * N + N
                          + B * T * N)
    cost = pl.CostEstimate(flops=flops, transcendentals=B * T * H,
                           bytes_accessed=bytes_accessed)

    # Single gridless pallas_call: all operands are whole-array VMEM blocks.
    # For production batch sizes add a leading "parallel" batch grid axis
    # (shards across v7x's two TensorCores) and size batch tiles against the
    # 64 MiB v7x VMEM.
    out = pl.pallas_call(
        _harmony_rnn_kernel,
        out_shape=jax.ShapeDtypeStruct((B * T, N), jnp.float32),
        scratch_shapes=[pltpu.VMEM((B, T, H), jnp.float32)],
        cost_estimate=cost,
    )(x_tm, w_ih_t, w_hh_t, b_rnn, w_fc_t, b_fc)
    return out


def _reference_forward(prbt, params):
    """Pure-JAX reference (lax.scan) mirroring nn.RNN(tanh) + nn.Linear.

    Matmul precision pinned to HIGHEST so the f32 reference matches the
    kernel's f32 MXU (multi-pass) path within 1e-5.
    """
    B, T, N = prbt.shape
    H = params["w_hh"].shape[0]
    hi = jax.lax.Precision.HIGHEST
    x_tm = jnp.transpose(prbt, (1, 0, 2))  # (T, B, N)

    def step(h, x_t):
        h_new = jnp.tanh(
            jnp.dot(x_t, params["w_ih"].T, precision=hi) + params["b_ih"]
            + jnp.dot(h, params["w_hh"].T, precision=hi) + params["b_hh"]
        )
        return h_new, h_new

    h0 = jnp.zeros((B, H), jnp.float32)
    _, hs = jax.lax.scan(step, h0, x_tm)                      # (T, B, H)
    ys = jnp.transpose(hs, (1, 0, 2))                         # (B, T, H)
    out = jnp.dot(ys, params["w_fc"].T, precision=hi) + params["b_fc"]
    return out.reshape(-1, N)


def _init_params(key, n_note_class, hidden_size):
    """Deterministic synthetic weights (shapes match nn.RNN / nn.Linear)."""
    ks = jax.random.split(key, 6)
    scale = 0.1
    return {
        "w_ih": scale * jax.random.normal(ks[0], (hidden_size, n_note_class), jnp.float32),
        "w_hh": scale * jax.random.normal(ks[1], (hidden_size, hidden_size), jnp.float32),
        "b_ih": scale * jax.random.normal(ks[2], (hidden_size,), jnp.float32),
        "b_hh": scale * jax.random.normal(ks[3], (hidden_size,), jnp.float32),
        "w_fc": scale * jax.random.normal(ks[4], (n_note_class, hidden_size), jnp.float32),
        "b_fc": scale * jax.random.normal(ks[5], (n_note_class,), jnp.float32),
    }


if __name__ == "__main__":
    # Small shapes implied by the forward: batch=2, seq=8, n_note_class=16, hidden=32.
    B, T, N, H = 2, 8, 16, 32
    key = jax.random.PRNGKey(0)
    k_in, k_par = jax.random.split(key)

    # Piano-roll batch tensor: (B, T, n_note_class), float32 in [0, 1).
    prbt = jax.random.uniform(k_in, (B, T, N), jnp.float32)
    params = _init_params(k_par, N, H)

    out = harmony_rnn_forward(prbt, params)
    out = jax.block_until_ready(out)

    ref = jax.block_until_ready(_reference_forward(prbt, params))
    assert out.shape == (B * T, N), out.shape
    np.testing.assert_allclose(np.asarray(out), np.asarray(ref), rtol=1e-5, atol=1e-5)

    print("KERNEL_OK")
</pallas_src>

<mosaic_0001>
module attributes {stable_mosaic.version = 11 : i64} {
  func.func @_harmony_rnn_kernel(%arg0: memref<16x16xf32, #tpu.memory_space<vmem>>, %arg1: memref<16x32xf32, #tpu.memory_space<vmem>>, %arg2: memref<32x32xf32, #tpu.memory_space<vmem>>, %arg3: memref<1x32xf32, #tpu.memory_space<vmem>>, %arg4: memref<32x16xf32, #tpu.memory_space<vmem>>, %arg5: memref<1x16xf32, #tpu.memory_space<vmem>>, %arg6: memref<16x16xf32, #tpu.memory_space<vmem>>, %arg7: memref<2x8x32xf32, #tpu.memory_space<vmem>>) attributes {dimension_semantics = [], scalar_prefetch = 0 : i64, scratch_operands = 1 : i64, tpu.core_type = #tpu.core_type<tc>} {
    %c0 = arith.constant 0 : index
    %c0_0 = arith.constant 0 : index
    %0 = vector.load %arg2[%c0, %c0_0] : memref<32x32xf32, #tpu.memory_space<vmem>>, vector<32x32xf32>
    %c0_1 = arith.constant 0 : index
    %c0_2 = arith.constant 0 : index
    %1 = vector.load %arg0[%c0_1, %c0_2] : memref<16x16xf32, #tpu.memory_space<vmem>>, vector<16x16xf32>
    %c0_3 = arith.constant 0 : index
    %c0_4 = arith.constant 0 : index
    %2 = vector.load %arg1[%c0_3, %c0_4] : memref<16x32xf32, #tpu.memory_space<vmem>>, vector<16x32xf32>
    %cst = arith.constant dense<0.000000e+00> : vector<16x32xf32>
    %3 = tpu.matmul %1, %2, %cst {dimension_numbers = #tpu.dot_dimension_numbers<[1], [0], [0], [1], [0, 0, 1, 1], [], []>} : vector<16x16xf32>, vector<16x32xf32>, vector<16x32xf32> -> vector<16x32xf32>
    %c0_5 = arith.constant 0 : index
    %c0_6 = arith.constant 0 : index
    %4 = vector.load %arg3[%c0_5, %c0_6] : memref<1x32xf32, #tpu.memory_space<vmem>>, vector<1x32xf32>
    %5 = vector.broadcast %4 : vector<1x32xf32> to vector<16x32xf32>
    %6 = arith.addf %3, %5 : vector<16x32xf32>
    %cst_7 = arith.constant 0.000000e+00 : f32
    %7 = vector.broadcast %cst_7 : f32 to vector<2x32xf32>
    %8 = vector.extract_strided_slice %6 {offsets = [0, 0], sizes = [2, 32], strides = [1, 1]} : vector<16x32xf32> to vector<2x32xf32>
    %cst_8 = arith.constant dense<0.000000e+00> : vector<2x32xf32>
    %9 = tpu.matmul %7, %0, %cst_8 {dimension_numbers = #tpu.dot_dimension_numbers<[1], [0], [0], [1], [0, 0, 1, 1], [], []>} : vector<2x32xf32>, vector<32x32xf32>, vector<2x32xf32> -> vector<2x32xf32>
    %10 = arith.addf %8, %9 : vector<2x32xf32>
    %11 = math.tanh %10 : vector<2x32xf32>
    %c0_9 = arith.constant 0 : index
    %c0_10 = arith.constant 0 : index
    %c0_11 = arith.constant 0 : index
    %12 = vector.load %arg7[%c0_9, %c0_10, %c0_11] : memref<2x8x32xf32, #tpu.memory_space<vmem>>, vector<2x1x32xf32>
    %13 = vector.shape_cast %12 : vector<2x1x32xf32> to vector<2x32xf32>
    %14 = vector.shape_cast %11 : vector<2x32xf32> to vector<2x1x32xf32>
    tpu.vector_store %arg7[%c0_9, %c0_10, %c0_11], %14 {strides = array<i32>} : memref<2x8x32xf32, #tpu.memory_space<vmem>>, vector<2x1x32xf32>,
    %15 = vector.extract_strided_slice %6 {offsets = [2, 0], sizes = [2, 32], strides = [1, 1]} : vector<16x32xf32> to vector<2x32xf32>
    %cst_12 = arith.constant dense<0.000000e+00> : vector<2x32xf32>
    %16 = tpu.matmul %11, %0, %cst_12 {dimension_numbers = #tpu.dot_dimension_numbers<[1], [0], [0], [1], [0, 0, 1, 1], [], []>} : vector<2x32xf32>, vector<32x32xf32>, vector<2x32xf32> -> vector<2x32xf32>
    %17 = arith.addf %15, %16 : vector<2x32xf32>
    %18 = math.tanh %17 : vector<2x32xf32>
    %c0_13 = arith.constant 0 : index
    %c1 = arith.constant 1 : index
    %c0_14 = arith.constant 0 : index
    %19 = vector.load %arg7[%c0_13, %c1, %c0_14] : memref<2x8x32xf32, #tpu.memory_space<vmem>>, vector<2x1x32xf32>
    %20 = vector.shape_cast %19 : vector<2x1x32xf32> to vector<2x32xf32>
    %21 = vector.shape_cast %18 : vector<2x32xf32> to vector<2x1x32xf32>
    tpu.vector_store %arg7[%c0_13, %c1, %c0_14], %21 {strides = array<i32>} : memref<2x8x32xf32, #tpu.memory_space<vmem>>, vector<2x1x32xf32>,
    %22 = vector.extract_strided_slice %6 {offsets = [4, 0], sizes = [2, 32], strides = [1, 1]} : vector<16x32xf32> to vector<2x32xf32>
    %cst_15 = arith.constant dense<0.000000e+00> : vector<2x32xf32>
    %23 = tpu.matmul %18, %0, %cst_15 {dimension_numbers = #tpu.dot_dimension_numbers<[1], [0], [0], [1], [0, 0, 1, 1], [], []>} : vector<2x32xf32>, vector<32x32xf32>, vector<2x32xf32> -> vector<2x32xf32>
    %24 = arith.addf %22, %23 : vector<2x32xf32>
    %25 = math.tanh %24 : vector<2x32xf32>
    %c0_16 = arith.constant 0 : index
    %c2 = arith.constant 2 : index
    %c0_17 = arith.constant 0 : index
    %26 = vector.load %arg7[%c0_16, %c2, %c0_17] : memref<2x8x32xf32, #tpu.memory_space<vmem>>, vector<2x1x32xf32>
    %27 = vector.shape_cast %26 : vector<2x1x32xf32> to vector<2x32xf32>
    %28 = vector.shape_cast %25 : vector<2x32xf32> to vector<2x1x32xf32>
    tpu.vector_store %arg7[%c0_16, %c2, %c0_17], %28 {strides = array<i32>} : memref<2x8x32xf32, #tpu.memory_space<vmem>>, vector<2x1x32xf32>,
    %29 = vector.extract_strided_slice %6 {offsets = [6, 0], sizes = [2, 32], strides = [1, 1]} : vector<16x32xf32> to vector<2x32xf32>
    %cst_18 = arith.constant dense<0.000000e+00> : vector<2x32xf32>
    %30 = tpu.matmul %25, %0, %cst_18 {dimension_numbers = #tpu.dot_dimension_numbers<[1], [0], [0], [1], [0, 0, 1, 1], [], []>} : vector<2x32xf32>, vector<32x32xf32>, vector<2x32xf32> -> vector<2x32xf32>
    %31 = arith.addf %29, %30 : vector<2x32xf32>
    %32 = math.tanh %31 : vector<2x32xf32>
    %c0_19 = arith.constant 0 : index
    %c3 = arith.constant 3 : index
    %c0_20 = arith.constant 0 : index
    %33 = vector.load %arg7[%c0_19, %c3, %c0_20] : memref<2x8x32xf32, #tpu.memory_space<vmem>>, vector<2x1x32xf32>
    %34 = vector.shape_cast %33 : vector<2x1x32xf32> to vector<2x32xf32>
    %35 = vector.shape_cast %32 : vector<2x32xf32> to vector<2x1x32xf32>
    tpu.vector_store %arg7[%c0_19, %c3, %c0_20], %35 {strides = array<i32>} : memref<2x8x32xf32, #tpu.memory_space<vmem>>, vector<2x1x32xf32>,
    %36 = vector.extract_strided_slice %6 {offsets = [8, 0], sizes = [2, 32], strides = [1, 1]} : vector<16x32xf32> to vector<2x32xf32>
    %cst_21 = arith.constant dense<0.000000e+00> : vector<2x32xf32>
    %37 = tpu.matmul %32, %0, %cst_21 {dimension_numbers = #tpu.dot_dimension_numbers<[1], [0], [0], [1], [0, 0, 1, 1], [], []>} : vector<2x32xf32>, vector<32x32xf32>, vector<2x32xf32> -> vector<2x32xf32>
    %38 = arith.addf %36, %37 : vector<2x32xf32>
    %39 = math.tanh %38 : vector<2x32xf32>
    %c0_22 = arith.constant 0 : index
    %c4 = arith.constant 4 : index
    %c0_23 = arith.constant 0 : index
    %40 = vector.load %arg7[%c0_22, %c4, %c0_23] : memref<2x8x32xf32, #tpu.memory_space<vmem>>, vector<2x1x32xf32>
    %41 = vector.shape_cast %40 : vector<2x1x32xf32> to vector<2x32xf32>
    %42 = vector.shape_cast %39 : vector<2x32xf32> to vector<2x1x32xf32>
    tpu.vector_store %arg7[%c0_22, %c4, %c0_23], %42 {strides = array<i32>} : memref<2x8x32xf32, #tpu.memory_space<vmem>>, vector<2x1x32xf32>,
    %43 = vector.extract_strided_slice %6 {offsets = [10, 0], sizes = [2, 32], strides = [1, 1]} : vector<16x32xf32> to vector<2x32xf32>
    %cst_24 = arith.constant dense<0.000000e+00> : vector<2x32xf32>
    %44 = tpu.matmul %39, %0, %cst_24 {dimension_numbers = #tpu.dot_dimension_numbers<[1], [0], [0], [1], [0, 0, 1, 1], [], []>} : vector<2x32xf32>, vector<32x32xf32>, vector<2x32xf32> -> vector<2x32xf32>
    %45 = arith.addf %43, %44 : vector<2x32xf32>
    %46 = math.tanh %45 : vector<2x32xf32>
    %c0_25 = arith.constant 0 : index
    %c5 = arith.constant 5 : index
    %c0_26 = arith.constant 0 : index
    %47 = vector.load %arg7[%c0_25, %c5, %c0_26] : memref<2x8x32xf32, #tpu.memory_space<vmem>>, vector<2x1x32xf32>
    %48 = vector.shape_cast %47 : vector<2x1x32xf32> to vector<2x32xf32>
    %49 = vector.shape_cast %46 : vector<2x32xf32> to vector<2x1x32xf32>
    tpu.vector_store %arg7[%c0_25, %c5, %c0_26], %49 {strides = array<i32>} : memref<2x8x32xf32, #tpu.memory_space<vmem>>, vector<2x1x32xf32>,
    %50 = vector.extract_strided_slice %6 {offsets = [12, 0], sizes = [2, 32], strides = [1, 1]} : vector<16x32xf32> to vector<2x32xf32>
    %cst_27 = arith.constant dense<0.000000e+00> : vector<2x32xf32>
    %51 = tpu.matmul %46, %0, %cst_27 {dimension_numbers = #tpu.dot_dimension_numbers<[1], [0], [0], [1], [0, 0, 1, 1], [], []>} : vector<2x32xf32>, vector<32x32xf32>, vector<2x32xf32> -> vector<2x32xf32>
    %52 = arith.addf %50, %51 : vector<2x32xf32>
    %53 = math.tanh %52 : vector<2x32xf32>
    %c0_28 = arith.constant 0 : index
    %c6 = arith.constant 6 : index
    %c0_29 = arith.constant 0 : index
    %54 = vector.load %arg7[%c0_28, %c6, %c0_29] : memref<2x8x32xf32, #tpu.memory_space<vmem>>, vector<2x1x32xf32>
    %55 = vector.shape_cast %54 : vector<2x1x32xf32> to vector<2x32xf32>
    %56 = vector.shape_cast %53 : vector<2x32xf32> to vector<2x1x32xf32>
    tpu.vector_store %arg7[%c0_28, %c6, %c0_29], %56 {strides = array<i32>} : memref<2x8x32xf32, #tpu.memory_space<vmem>>, vector<2x1x32xf32>,
    %57 = vector.extract_strided_slice %6 {offsets = [14, 0], sizes = [2, 32], strides = [1, 1]} : vector<16x32xf32> to vector<2x32xf32>
    %cst_30 = arith.constant dense<0.000000e+00> : vector<2x32xf32>
    %58 = tpu.matmul %53, %0, %cst_30 {dimension_numbers = #tpu.dot_dimension_numbers<[1], [0], [0], [1], [0, 0, 1, 1], [], []>} : vector<2x32xf32>, vector<32x32xf32>, vector<2x32xf32> -> vector<2x32xf32>
    %59 = arith.addf %57, %58 : vector<2x32xf32>
    %60 = math.tanh %59 : vector<2x32xf32>
    %c0_31 = arith.constant 0 : index
    %c7 = arith.constant 7 : index
    %c0_32 = arith.constant 0 : index
    %61 = vector.load %arg7[%c0_31, %c7, %c0_32] : memref<2x8x32xf32, #tpu.memory_space<vmem>>, vector<2x1x32xf32>
    %62 = vector.shape_cast %61 : vector<2x1x32xf32> to vector<2x32xf32>
    %63 = vector.shape_cast %60 : vector<2x32xf32> to vector<2x1x32xf32>
    tpu.vector_store %arg7[%c0_31, %c7, %c0_32], %63 {strides = array<i32>} : memref<2x8x32xf32, #tpu.memory_space<vmem>>, vector<2x1x32xf32>,
    %c0_33 = arith.constant 0 : index
    %c0_34 = arith.constant 0 : index
    %c0_35 = arith.constant 0 : index
    %64 = vector.load %arg7[%c0_33, %c0_34, %c0_35] : memref<2x8x32xf32, #tpu.memory_space<vmem>>, vector<2x8x32xf32>
    %65 = vector.shape_cast %64 : vector<2x8x32xf32> to vector<16x32xf32>
    %c0_36 = arith.constant 0 : index
    %c0_37 = arith.constant 0 : index
    %66 = vector.load %arg4[%c0_36, %c0_37] : memref<32x16xf32, #tpu.memory_space<vmem>>, vector<32x16xf32>
    %cst_38 = arith.constant dense<0.000000e+00> : vector<16x16xf32>
    %67 = tpu.matmul %65, %66, %cst_38 {dimension_numbers = #tpu.dot_dimension_numbers<[1], [0], [0], [1], [0, 0, 1, 1], [], []>} : vector<16x32xf32>, vector<32x16xf32>, vector<16x16xf32> -> vector<16x16xf32>
    %c0_39 = arith.constant 0 : index
    %c0_40 = arith.constant 0 : index
    %68 = vector.load %arg5[%c0_39, %c0_40] : memref<1x16xf32, #tpu.memory_space<vmem>>, vector<1x16xf32>
    %69 = vector.broadcast %68 : vector<1x16xf32> to vector<16x16xf32>
    %70 = arith.addf %67, %69 : vector<16x16xf32>
    %c0_41 = arith.constant 0 : index
    %c0_42 = arith.constant 0 : index
    %71 = vector.load %arg6[%c0_41, %c0_42] : memref<16x16xf32, #tpu.memory_space<vmem>>, vector<16x16xf32>
    tpu.vector_store %arg6[%c0_41, %c0_42], %70 {strides = array<i32>} : memref<16x16xf32, #tpu.memory_space<vmem>>, vector<16x16xf32>,
    return
  }
}

</mosaic_0001>

<llo_original>
// kernel: harmony_rnn_forward.1
$region0: #{harmony_rnn_forward.1}
  #allocation0 [shape = 'u32[]', space=smem, size = 0x4, offset = 0x4, fixed_abs, tag = 'smem constant byte address 0x4 - core index']
  #allocation1 [shape = 'u32[144,128]{1,0:T(1,128)}', space=vmem, size = 0x12000, scoped, tag = 'internal scratch']
  #allocation2 [shape = 'f32[2,8,32]{2,1,0:T(8,128)}', space=vmem, size = 0x2000, scoped, tag = 'scratch operand']
  %s0 = inlined_call_operand.vmem [shape: f32[16,16], index: 0, kind: input, shape index: {}]
  %s1 = inlined_call_operand.vmem [shape: f32[16,32], index: 1, kind: input, shape index: {}]
  %s2 = inlined_call_operand.vmem [shape: f32[32,32], index: 2, kind: input, shape index: {}]
  %s3 = inlined_call_operand.vmem [shape: f32[1,32], index: 3, kind: input, shape index: {}]
  %s4 = inlined_call_operand.vmem [shape: f32[32,16], index: 4, kind: input, shape index: {}]
  %s5 = inlined_call_operand.vmem [shape: f32[1,16], index: 5, kind: input, shape index: {}]
  %s6 = inlined_call_operand.hbm [shape: f32[16,16], index: 6, kind: output, shape index: {}]
  %s7 = sld [smem:[#allocation0]]
  $region34: #{harmony_rnn_forward.1} parent=0
    _
  %s9 = ssub.s32 1, %s7
  %s10 = scalar_select 0, %s9, %s7
  $region1: #{harmony_rnn_forward.1} parent=0
    #allocation3 [shape = 'u8[8192]{0}', space=vmem, size = 0x2000, scoped, tag = 'output window, operand 0, single buffered']
    #allocation4 [shape = 's32[1]{0}', space=sflag, size = 0x4, scoped, tag = 'scoped memory for harmony_rnn_forward.1']
    %11 = vsyncpa [#allocation4], 0
    // Predicated region
    $region2: #{harmony_rnn_forward.1} parent=1 // pred_check
      _
    $region3: #{harmony_rnn_forward.1} parent=1 // pred_check_branch
      %13 = sbr.rel (0) target = $region5
    $region4: #{harmony_rnn_forward.1} parent=1 // pred_region
      _
    $region5: #{harmony_rnn_forward.1} parent=1 // pred_fallthru
      _
    // Predicated region
    $region6: #{harmony_rnn_forward.1} parent=1 // pred_check
      _
    $region7: #{harmony_rnn_forward.1} parent=1 // pred_check_branch
      %15 = sbr.rel (0) target = $region9
    $region8: #{harmony_rnn_forward.1} parent=1 // pred_region
      _
    $region9: #{harmony_rnn_forward.1} parent=1 // pred_fallthru
      _
    // Predicated region
    $region10: #{harmony_rnn_forward.1} parent=1 // pred_check
      _
    $region11: #{harmony_rnn_forward.1} parent=1 // pred_check_branch
      %17 = sbr.rel (0) target = $region13
    $region12: #{harmony_rnn_forward.1} parent=1 // pred_region
      _
    $region13: #{harmony_rnn_forward.1} parent=1 // pred_fallthru
      _
    // Predicated region
    $region14: #{harmony_rnn_forward.1} parent=1 // pred_check
      _
    $region15: #{harmony_rnn_forward.1} parent=1 // pred_check_branch
      %19 = sbr.rel (0) target = $region17
    $region16: #{harmony_rnn_forward.1} parent=1 // pred_region
      _
    $region17: #{harmony_rnn_forward.1} parent=1 // pred_fallthru
      _
    // Predicated region
    $region18: #{harmony_rnn_forward.1} parent=1 // pred_check
      _
    $region19: #{harmony_rnn_forward.1} parent=1 // pred_check_branch
      %21 = sbr.rel (0) target = $region21
    $region20: #{harmony_rnn_forward.1} parent=1 // pred_region
      _
    $region21: #{harmony_rnn_forward.1} parent=1 // pred_fallthru
      _
    // Predicated region
    $region22: #{harmony_rnn_forward.1} parent=1 // pred_check
      _
    $region23: #{harmony_rnn_forward.1} parent=1 // pred_check_branch
      %23 = sbr.rel (0) target = $region25
    $region24: #{harmony_rnn_forward.1} parent=1 // pred_region
      _
    $region25: #{harmony_rnn_forward.1} parent=1 // pred_fallthru
      _
    %v24 = vld [vmem:[%s2] sm:$0xff]
    %v25 = vld [vmem:[%s2 + $0x8] sm:$0xff]
    %v26 = vld [vmem:[%s2 + $0x10] sm:$0xff]
    %v27 = vld [vmem:[%s2 + $0x18] sm:$0xff]
    %v28 = vld [vmem:[%s0] sm:$0xff]
    %v29 = vld [vmem:[%s0 + $0x8] sm:$0xff]
    %v30 = vld [vmem:[%s1] sm:$0xff]
    %v31 = vld [vmem:[%s1 + $0x8] sm:$0xff]
    %v32 = vld [vmem:[%s3] sm:$0x1]
    %v34 = vlaneseq
    %v35 = vshrl.u32 %v34, 7
    %v36 = vsub.s32 0, %v35
    %v37 = vrot.slane %v32, %v36
    %vm39 = vcmask 130048
    %v41 = vsel %vm39, %v28, 0
    %v44 = vsel %vm39, %v29, 0
    %46 = vmatprep.subr.mxu0 0.0
    %47 = vmatpush1.msra.mxu0 %v30
    %48 = vmatprep.subr.mxu0 0.0
    %49 = vmatpush1.msra.mxu0 %v31
    %50 = vmatprep.subr.mxu0 0.0
    %51 = vmatpush1.msra.mxu0 0.0
    %52 = vmatprep.subr.mxu0 0.0
    %53 = vmatpush1.msra.mxu0 0.0
    %54 = vmatprep.subr.mxu0 0.0
    %55 = vmatpush1.msra.mxu0 0.0
    %56 = vmatprep.subr.mxu0 0.0
    %57 = vmatpush1.msra.mxu0 0.0
    %58 = vmatprep.subr.mxu0 0.0
    %59 = vmatpush1.msra.mxu0 0.0
    %60 = vmatprep.subr.mxu0 0.0
    %61 = vmatpush1.msra.mxu0 0.0
    %62 = vmatprep.subr.mxu0 0.0
    %63 = vmatpush1.msra.mxu0 0.0
    %64 = vmatprep.subr.mxu0 0.0
    %65 = vmatpush1.msra.mxu0 0.0
    %66 = vmatprep.subr.mxu0 0.0
    %67 = vmatpush1.msra.mxu0 0.0
    %68 = vmatprep.subr.mxu0 0.0
    %69 = vmatpush1.msra.mxu0 0.0
    %70 = vmatprep.subr.mxu0 0.0
    %71 = vmatpush1.msra.mxu0 0.0
    %72 = vmatprep.subr.mxu0 0.0
    %73 = vmatpush1.msra.mxu0 0.0
    %74 = vmatprep.subr.mxu0 0.0
    %75 = vmatpush1.msra.mxu0 0.0
    %76 = vmatprep.subr.mxu0 0.0
    %77 = vmatpush1.msra.mxu0 0.0
    %78 = vmatprep.subr.mxu0 0.0
    %79 = vmatpush1.msra.mxu0 0.0
    %80 = vmatprep.subr.mxu0 0.0
    %81 = vmatpush1.msra.mxu0 0.0
    %82 = vmatprep.subr.mxu0 0.0
    %83 = vmatpush1.msra.mxu0 0.0
    %84 = vmatprep.subr.mxu0 0.0
    %85 = vmatpush1.msra.mxu0 0.0
    %86 = vmatprep.subr.mxu0 0.0
    %87 = vmatpush1.msra.mxu0 0.0
    %88 = vmatprep.subr.mxu0 0.0
    %89 = vmatpush1.msra.mxu0 0.0
    %90 = vmatprep.subr.mxu0 0.0
    %91 = vmatpush1.msra.mxu0 0.0
    %92 = vmatprep.subr.mxu0 0.0
    %93 = vmatpush1.msra.mxu0 0.0
    %94 = vmatprep.subr.mxu0 0.0
    %95 = vmatpush1.msra.mxu0 0.0
    %96 = vmatprep.subr.mxu0 0.0
    %97 = vmatpush1.msra.mxu0 0.0
    %98 = vmatprep.subr.mxu0 0.0
    %99 = vmatpush1.msra.mxu0 0.0
    %100 = vmatprep.subr.mxu0 0.0
    %101 = vmatpush1.msra.mxu0 0.0
    %102 = vmatprep.subr.mxu0 0.0
    %103 = vmatpush1.msra.mxu0 0.0
    %104 = vmatprep.subr.mxu0 0.0
    %105 = vmatpush1.msra.mxu0 0.0
    %106 = vmatprep.subr.mxu0 0.0
    %107 = vmatpush1.msra.mxu0 0.0
    %108 = vmatprep.subr.mxu0 0.0
    %109 = vmatpush1.msra.mxu0 0.0
    %110 = vmatprep.mubr.f32.mxu0 0.0
    %111 = vmatmul.mubr.f32.gmra.mrb[0].mxu0 %v41
    %v112 = vpop.f32.mrb[0].mxu0
    %v113 = vadd.f32 %v37, %v112
    %v114 = vpop.f32.mrb[0].mxu0
    %115 = vmatprep.mubr.f32.mxu0 0.0
    %116 = vmatmul.mubr.f32.gmra.mrb[0].mxu0 %v44
    %v117 = vpop.f32.mrb[0].mxu0
    %v118 = vadd.f32 %v37, %v117
    %v119 = vpop.f32.mrb[0].mxu0
    %120 = vdwg.mxu0
    %vm121 = vcmask 261120
    %v123 = vsel %vm121, 0.0, 0
    %125 = vmatprep.subr.mxu0 0.0
    %126 = vmatpush1.msra.mxu0 %v24
    %127 = vmatprep.subr.mxu0 0.0
    %128 = vmatpush1.msra.mxu0 %v25
    %129 = vmatprep.subr.mxu0 0.0
    %130 = vmatpush1.msra.mxu0 %v26
    %131 = vmatprep.subr.mxu0 0.0
    %132 = vmatpush1.msra.mxu0 %v27
    %133 = vmatprep.subr.mxu0 0.0
    %134 = vmatpush1.msra.mxu0 0.0
    %135 = vmatprep.subr.mxu0 0.0
    %136 = vmatpush1.msra.mxu0 0.0
    %137 = vmatprep.subr.mxu0 0.0
    %138 = vmatpush1.msra.mxu0 0.0
    %139 = vmatprep.subr.mxu0 0.0
    %140 = vmatpush1.msra.mxu0 0.0
    %141 = vmatprep.subr.mxu0 0.0
    %142 = vmatpush1.msra.mxu0 0.0
    %143 = vmatprep.subr.mxu0 0.0
    %144 = vmatpush1.msra.mxu0 0.0
    %145 = vmatprep.subr.mxu0 0.0
    %146 = vmatpush1.msra.mxu0 0.0
    %147 = vmatprep.subr.mxu0 0.0
    %148 = vmatpush1.msra.mxu0 0.0
    %149 = vmatprep.subr.mxu0 0.0
    %150 = vmatpush1.msra.mxu0 0.0
    %151 = vmatprep.subr.mxu0 0.0
    %152 = vmatpush1.msra.mxu0 0.0
    %153 = vmatprep.subr.mxu0 0.0
    %154 = vmatpush1.msra.mxu0 0.0
    %155 = vmatprep.subr.mxu0 0.0
    %156 = vmatpush1.msra.mxu0 0.0
    %157 = vmatprep.subr.mxu0 0.0
    %158 = vmatpush1.msra.mxu0 0.0
    %159 = vmatprep.subr.mxu0 0.0
    %160 = vmatpush1.msra.mxu0 0.0
    %161 = vmatprep.subr.mxu0 0.0
    %162 = vmatpush1.msra.mxu0 0.0
    %163 = vmatprep.subr.mxu0 0.0
    %164 = vmatpush1.msra.mxu0 0.0
    %165 = vmatprep.subr.mxu0 0.0
    %166 = vmatpush1.msra.mxu0 0.0
    %167 = vmatprep.subr.mxu0 0.0
    %168 = vmatpush1.msra.mxu0 0.0
    %169 = vmatprep.subr.mxu0 0.0
    %170 = vmatpush1.msra.mxu0 0.0
    %171 = vmatprep.subr.mxu0 0.0
    %172 = vmatpush1.msra.mxu0 0.0
    %173 = vmatprep.subr.mxu0 0.0
    %174 = vmatpush1.msra.mxu0 0.0
    %175 = vmatprep.subr.mxu0 0.0
    %176 = vmatpush1.msra.mxu0 0.0
    %177 = vmatprep.subr.mxu0 0.0
    %178 = vmatpush1.msra.mxu0 0.0
    %179 = vmatprep.subr.mxu0 0.0
    %180 = vmatpush1.msra.mxu0 0.0
    %181 = vmatprep.subr.mxu0 0.0
    %182 = vmatpush1.msra.mxu0 0.0
    %183 = vmatprep.subr.mxu0 0.0
    %184 = vmatpush1.msra.mxu0 0.0
    %185 = vmatprep.subr.mxu0 0.0
    %186 = vmatpush1.msra.mxu0 0.0
    %187 = vmatprep.subr.mxu0 0.0
    %188 = vmatpush1.msra.mxu0 0.0
    %189 = vmatprep.mubr.f32.mxu0 0.0
    %190 = vmatmul.mubr.f32.gmra.mrb[0].mxu0 %v123
    %v191 = vpop.f32.mrb[0].mxu0
    %v192 = vadd.f32 0.0, %v191
    %v193 = vpop.f32.mrb[0].mxu0
    %194 = vdwg.mxu0
    %v195 = vadd.f32 %v113, %v192
    %v196 = vtanh.pop %v195
    %v199 = vunpack.c.l.s4 1966171168
    %v200 = vunpack.c.0.s8 %v199
    %v201 = vlaneseq
    %v202 = vshrl.u32 %v201, 7
    %v203 = vsub.s32 %v200, %v202
    %v204 = vrot.slane %v196, %v203
    %v205 = vcombine.high %v204, %v204
    %v207 = vunpack.c.l.s4 1966171168
    %v208 = vunpack.c.0.s8 %v207
    %v209 = vlaneseq
    %v210 = vshrl.u32 %v209, 7
    %v211 = vsub.s32 %v208, %v210
    %v212 = vrot.slane %v204, %v211
    %v214 = vunpack.c.l.s4 1966171168
    %v215 = vunpack.c.0.s8 %v214
    %v216 = vlaneseq
    %v217 = vshrl.u32 %v216, 7
    %v218 = vsub.s32 %v215, %v217
    %v219 = vrot.slane %v205, %v218
    %vm222 = vcmask 253952
    %223 = vst.msk [vmem:[#allocation2] sm:$0x1] %vm222, %v212
    %224 = vst.msk [vmem:[#allocation2 + $0x8] sm:$0x1] %vm222, %v219
    %v225 = vsel %vm121, %v196, 0
    %227 = vmatprep.subr.mxu0 0.0
    %228 = vmatpush1.msra.mxu0 %v24
    %229 = vmatprep.subr.mxu0 0.0
    %230 = vmatpush1.msra.mxu0 %v25
    %231 = vmatprep.subr.mxu0 0.0
    %232 = vmatpush1.msra.mxu0 %v26
    %233 = vmatprep.subr.mxu0 0.0
    %234 = vmatpush1.msra.mxu0 %v27
    %235 = vmatprep.subr.mxu0 0.0
    %236 = vmatpush1.msra.mxu0 0.0
    %237 = vmatprep.subr.mxu0 0.0
    %238 = vmatpush1.msra.mxu0 0.0
    %239 = vmatprep.subr.mxu0 0.0
    %240 = vmatpush1.msra.mxu0 0.0
    %241 = vmatprep.subr.mxu0 0.0
    %242 = vmatpush1.msra.mxu0 0.0
    %243 = vmatprep.subr.mxu0 0.0
    %244 = vmatpush1.msra.mxu0 0.0
    %245 = vmatprep.subr.mxu0 0.0
    %246 = vmatpush1.msra.mxu0 0.0
    %247 = vmatprep.subr.mxu0 0.0
    %248 = vmatpush1.msra.mxu0 0.0
    %249 = vmatprep.subr.mxu0 0.0
    %250 = vmatpush1.msra.mxu0 0.0
    %251 = vmatprep.subr.mxu0 0.0
    %252 = vmatpush1.msra.mxu0 0.0
    %253 = vmatprep.subr.mxu0 0.0
    %254 = vmatpush1.msra.mxu0 0.0
    %255 = vmatprep.subr.mxu0 0.0
    %256 = vmatpush1.msra.mxu0 0.0
    %257 = vmatprep.subr.mxu0 0.0
    %258 = vmatpush1.msra.mxu0 0.0
    %259 = vmatprep.subr.mxu0 0.0
    %260 = vmatpush1.msra.mxu0 0.0
    %261 = vmatprep.subr.mxu0 0.0
    %262 = vmatpush1.msra.mxu0 0.0
    %263 = vmatprep.subr.mxu0 0.0
    %264 = vmatpush1.msra.mxu0 0.0
    %265 = vmatprep.subr.mxu0 0.0
    %266 = vmatpush1.msra.mxu0 0.0
    %267 = vmatprep.subr.mxu0 0.0
    %268 = vmatpush1.msra.mxu0 0.0
    %269 = vmatprep.subr.mxu0 0.0
    %270 = vmatpush1.msra.mxu0 0.0
    %271 = vmatprep.subr.mxu0 0.0
    %272 = vmatpush1.msra.mxu0 0.0
    %273 = vmatprep.subr.mxu0 0.0
    %274 = vmatpush1.msra.mxu0 0.0
    %275 = vmatprep.subr.mxu0 0.0
    %276 = vmatpush1.msra.mxu0 0.0
    %277 = vmatprep.subr.mxu0 0.0
    %278 = vmatpush1.msra.mxu0 0.0
    %279 = vmatprep.subr.mxu0 0.0
    %280 = vmatpush1.msra.mxu0 0.0
    %281 = vmatprep.subr.mxu0 0.0
    %282 = vmatpush1.msra.mxu0 0.0
    %283 = vmatprep.subr.mxu0 0.0
    %284 = vmatpush1.msra.mxu0 0.0
    %285 = vmatprep.subr.mxu0 0.0
    %286 = vmatpush1.msra.mxu0 0.0
    %287 = vmatprep.subr.mxu0 0.0
    %288 = vmatpush1.msra.mxu0 0.0
    %289 = vmatprep.subr.mxu0 0.0
    %290 = vmatpush1.msra.mxu0 0.0
    %291 = vmatprep.mubr.f32.mxu0 0.0
    %292 = vmatmul.mubr.f32.gmra.mrb[0].mxu0 %v225
    %v293 = vpop.f32.mrb[0].mxu0
    %v294 = vadd.f32 0.0, %v293
    %v295 = vpop.f32.mrb[0].mxu0
    %296 = vdwg.mxu0
    %v298 = vrot.slane %v294, 6
    %v300 = vadd.f32 %v113, %v298
    %v301 = vtanh.pop %v300
    %v304 = vunpack.c.l.s4 1966171168
    %v305 = vunpack.c.0.s8 %v304
    %v306 = vlaneseq
    %v307 = vshrl.u32 %v306, 7
    %v308 = vsub.s32 %v305, %v307
    %v309 = vrot.slane %v301, %v308
    %v310 = vcombine.high %v309, %v309
    %v312 = vunpack.c.l.s4 1966171168
    %v313 = vunpack.c.0.s8 %v312
    %v314 = vlaneseq
    %v315 = vshrl.u32 %v314, 7
    %v316 = vsub.s32 %v313, %v315
    %v317 = vrot.slane %v309, %v316
    %v319 = vunpack.c.l.s4 1966171168
    %v320 = vunpack.c.0.s8 %v319
    %v321 = vlaneseq
    %v322 = vshrl.u32 %v321, 7
    %v323 = vsub.s32 %v320, %v322
    %v324 = vrot.slane %v310, %v323
    %v325 = vcombine.high %v317, %v317
    %v326 = vcombine.high %v324, %v324
    %329 = vst.msk [vmem:[#allocation2 + $0x1] sm:$0x1] %vm222, %v325
    %330 = vst.msk [vmem:[#allocation2 + $0x9] sm:$0x1] %vm222, %v326
    %v331 = vrot.slane %v301, 2
    %v332 = vsel %vm121, %v331, 0
    %334 = vmatprep.subr.mxu0 0.0
    %335 = vmatpush1.msra.mxu0 %v24
    %336 = vmatprep.subr.mxu0 0.0
    %337 = vmatpush1.msra.mxu0 %v25
    %338 = vmatprep.subr.mxu0 0.0
    %339 = vmatpush1.msra.mxu0 %v26
    %340 = vmatprep.subr.mxu0 0.0
    %341 = vmatpush1.msra.mxu0 %v27
    %342 = vmatprep.subr.mxu0 0.0
    %343 = vmatpush1.msra.mxu0 0.0
    %344 = vmatprep.subr.mxu0 0.0
    %345 = vmatpush1.msra.mxu0 0.0
    %346 = vmatprep.subr.mxu0 0.0
    %347 = vmatpush1.msra.mxu0 0.0
    %348 = vmatprep.subr.mxu0 0.0
    %349 = vmatpush1.msra.mxu0 0.0
    %350 = vmatprep.subr.mxu0 0.0
    %351 = vmatpush1.msra.mxu0 0.0
    %352 = vmatprep.subr.mxu0 0.0
    %353 = vmatpush1.msra.mxu0 0.0
    %354 = vmatprep.subr.mxu0 0.0
    %355 = vmatpush1.msra.mxu0 0.0
    %356 = vmatprep.subr.mxu0 0.0
    %357 = vmatpush1.msra.mxu0 0.0
    %358 = vmatprep.subr.mxu0 0.0
    %359 = vmatpush1.msra.mxu0 0.0
    %360 = vmatprep.subr.mxu0 0.0
    %361 = vmatpush1.msra.mxu0 0.0
    %362 = vmatprep.subr.mxu0 0.0
    %363 = vmatpush1.msra.mxu0 0.0
    %364 = vmatprep.subr.mxu0 0.0
    %365 = vmatpush1.msra.mxu0 0.0
    %366 = vmatprep.subr.mxu0 0.0
    %367 = vmatpush1.msra.mxu0 0.0
    %368 = vmatprep.subr.mxu0 0.0
    %369 = vmatpush1.msra.mxu0 0.0
    %370 = vmatprep.subr.mxu0 0.0
    %371 = vmatpush1.msra.mxu0 0.0
    %372 = vmatprep.subr.mxu0 0.0
    %373 = vmatpush1.msra.mxu0 0.0
    %374 = vmatprep.subr.mxu0 0.0
    %375 = vmatpush1.msra.mxu0 0.0
    %376 = vmatprep.subr.mxu0 0.0
    %377 = vmatpush1.msra.mxu0 0.0
    %378 = vmatprep.subr.mxu0 0.0
    %379 = vmatpush1.msra.mxu0 0.0
    %380 = vmatprep.subr.mxu0 0.0
    %381 = vmatpush1.msra.mxu0 0.0
    %382 = vmatprep.subr.mxu0 0.0
    %383 = vmatpush1.msra.mxu0 0.0
    %384 = vmatprep.subr.mxu0 0.0
    %385 = vmatpush1.msra.mxu0 0.0
    %386 = vmatprep.subr.mxu0 0.0
    %387 = vmatpush1.msra.mxu0 0.0
    %388 = vmatprep.subr.mxu0 0.0
    %389 = vmatpush1.msra.mxu0 0.0
    %390 = vmatprep.subr.mxu0 0.0
    %391 = vmatpush1.msra.mxu0 0.0
    %392 = vmatprep.subr.mxu0 0.0
    %393 = vmatpush1.msra.mxu0 0.0
    %394 = vmatprep.subr.mxu0 0.0
    %395 = vmatpush1.msra.mxu0 0.0
    %396 = vmatprep.subr.mxu0 0.0
    %397 = vmatpush1.msra.mxu0 0.0
    %398 = vmatprep.mubr.f32.mxu0 0.0
    %399 = vmatmul.mubr.f32.gmra.mrb[0].mxu0 %v332
    %v400 = vpop.f32.mrb[0].mxu0
    %v401 = vadd.f32 0.0, %v400
    %v402 = vpop.f32.mrb[0].mxu0
    %403 = vdwg.mxu0
    %v405 = vrot.slane %v401, 4
    %v407 = vadd.f32 %v113, %v405
    %v408 = vtanh.pop %v407
    %v410 = vcombine.high %v408, %v408
    %v412 = vunpack.c.l.s4 1966171168
    %v413 = vunpack.c.0.s8 %v412
    %v414 = vlaneseq
    %v415 = vshrl.u32 %v414, 7
    %v416 = vsub.s32 %v413, %v415
    %v417 = vrot.slane %v410, %v416
    %v418 = vcombine.high %v417, %v417
    %v420 = vunpack.c.l.s4 1966171168
    %v421 = vunpack.c.0.s8 %v420
    %v422 = vlaneseq
    %v423 = vshrl.u32 %v422, 7
    %v424 = vsub.s32 %v421, %v423
    %v425 = vrot.slane %v417, %v424
    %v427 = vunpack.c.l.s4 1966171168
    %v428 = vunpack.c.0.s8 %v427
    %v429 = vlaneseq
    %v430 = vshrl.u32 %v429, 7
    %v431 = vsub.s32 %v428, %v430
    %v432 = vrot.slane %v418, %v431
    %435 = vst.msk [vmem:[#allocation2 + $0x2] sm:$0x1] %vm222, %v425
    %436 = vst.msk [vmem:[#allocation2 + $0xa] sm:$0x1] %vm222, %v432
    %v437 = vrot.slane %v408, 4
    %v438 = vsel %vm121, %v437, 0
    %440 = vmatprep.subr.mxu0 0.0
    %441 = vmatpush1.msra.mxu0 %v24
    %442 = vmatprep.subr.mxu0 0.0
    %443 = vmatpush1.msra.mxu0 %v25
    %444 = vmatprep.subr.mxu0 0.0
    %445 = vmatpush1.msra.mxu0 %v26
    %446 = vmatprep.subr.mxu0 0.0
    %447 = vmatpush1.msra.mxu0 %v27
    %448 = vmatprep.subr.mxu0 0.0
    %449 = vmatpush1.msra.mxu0 0.0
    %450 = vmatprep.subr.mxu0 0.0
    %451 = vmatpush1.msra.mxu0 0.0
    %452 = vmatprep.subr.mxu0 0.0
    %453 = vmatpush1.msra.mxu0 0.0
    %454 = vmatprep.subr.mxu0 0.0
    %455 = vmatpush1.msra.mxu0 0.0
    %456 = vmatprep.subr.mxu0 0.0
    %457 = vmatpush1.msra.mxu0 0.0
    %458 = vmatprep.subr.mxu0 0.0
    %459 = vmatpush1.msra.mxu0 0.0
    %460 = vmatprep.subr.mxu0 0.0
    %461 = vmatpush1.msra.mxu0 0.0
    %462 = vmatprep.subr.mxu0 0.0
    %463 = vmatpush1.msra.mxu0 0.0
    %464 = vmatprep.subr.mxu0 0.0
    %465 = vmatpush1.msra.mxu0 0.0
    %466 = vmatprep.subr.mxu0 0.0
    %467 = vmatpush1.msra.mxu0 0.0
    %468 = vmatprep.subr.mxu0 0.0
    %469 = vmatpush1.msra.mxu0 0.0
    %470 = vmatprep.subr.mxu0 0.0
    %471 = vmatpush1.msra.mxu0 0.0
    %472 = vmatprep.subr.mxu0 0.0
    %473 = vmatpush1.msra.mxu0 0.0
    %474 = vmatprep.subr.mxu0 0.0
    %475 = vmatpush1.msra.mxu0 0.0
    %476 = vmatprep.subr.mxu0 0.0
    %477 = vmatpush1.msra.mxu0 0.0
    %478 = vmatprep.subr.mxu0 0.0
    %479 = vmatpush1.msra.mxu0 0.0
    %480 = vmatprep.subr.mxu0 0.0
    %481 = vmatpush1.msra.mxu0 0.0
    %482 = vmatprep.subr.mxu0 0.0
    %483 = vmatpush1.msra.mxu0 0.0
    %484 = vmatprep.subr.mxu0 0.0
    %485 = vmatpush1.msra.mxu0 0.0
    %486 = vmatprep.subr.mxu0 0.0
    %487 = vmatpush1.msra.mxu0 0.0
    %488 = vmatprep.subr.mxu0 0.0
    %489 = vmatpush1.msra.mxu0 0.0
    %490 = vmatprep.subr.mxu0 0.0
    %491 = vmatpush1.msra.mxu0 0.0
    %492 = vmatprep.subr.mxu0 0.0
    %493 = vmatpush1.msra.mxu0 0.0
    %494 = vmatprep.subr.mxu0 0.0
    %495 = vmatpush1.msra.mxu0 0.0
    %496 = vmatprep.subr.mxu0 0.0
    %497 = vmatpush1.msra.mxu0 0.0
    %498 = vmatprep.subr.mxu0 0.0
    %499 = vmatpush1.msra.mxu0 0.0
    %500 = vmatprep.subr.mxu0 0.0
    %501 = vmatpush1.msra.mxu0 0.0
    %502 = vmatprep.subr.mxu0 0.0
    %503 = vmatpush1.msra.mxu0 0.0
    %504 = vmatprep.mubr.f32.mxu0 0.0
    %505 = vmatmul.mubr.f32.gmra.mrb[0].mxu0 %v438
    %v506 = vpop.f32.mrb[0].mxu0
    %v507 = vadd.f32 0.0, %v506
    %v508 = vpop.f32.mrb[0].mxu0
    %509 = vdwg.mxu0
    %v511 = vrot.slane %v507, 2
    %v513 = vadd.f32 %v113, %v511
    %v514 = vtanh.pop %v513
    %v516 = vcombine.high %v514, %v514
    %v518 = vunpack.c.l.s4 1966171168
    %v519 = vunpack.c.0.s8 %v518
    %v520 = vlaneseq
    %v521 = vshrl.u32 %v520, 7
    %v522 = vsub.s32 %v519, %v521
    %v523 = vrot.slane %v516, %v522
    %v524 = vcombine.high %v523, %v523
    %v526 = vunpack.c.l.s4 1966171168
    %v527 = vunpack.c.0.s8 %v526
    %v528 = vlaneseq
    %v529 = vshrl.u32 %v528, 7
    %v530 = vsub.s32 %v527, %v529
    %v531 = vrot.slane %v523, %v530
    %v533 = vunpack.c.l.s4 1966171168
    %v534 = vunpack.c.0.s8 %v533
    %v535 = vlaneseq
    %v536 = vshrl.u32 %v535, 7
    %v537 = vsub.s32 %v534, %v536
    %v538 = vrot.slane %v524, %v537
    %v539 = vcombine.high %v531, %v531
    %v540 = vcombine.high %v538, %v538
    %543 = vst.msk [vmem:[#allocation2 + $0x3] sm:$0x1] %vm222, %v539
    %544 = vst.msk [vmem:[#allocation2 + $0xb] sm:$0x1] %vm222, %v540
    %v545 = vrot.slane %v514, 6
    %v546 = vsel %vm121, %v545, 0
    %548 = vmatprep.subr.mxu0 0.0
    %549 = vmatpush1.msra.mxu0 %v24
    %550 = vmatprep.subr.mxu0 0.0
    %551 = vmatpush1.msra.mxu0 %v25
    %552 = vmatprep.subr.mxu0 0.0
    %553 = vmatpush1.msra.mxu0 %v26
    %554 = vmatprep.subr.mxu0 0.0
    %555 = vmatpush1.msra.mxu0 %v27
    %556 = vmatprep.subr.mxu0 0.0
    %557 = vmatpush1.msra.mxu0 0.0
    %558 = vmatprep.subr.mxu0 0.0
    %559 = vmatpush1.msra.mxu0 0.0
    %560 = vmatprep.subr.mxu0 0.0
    %561 = vmatpush1.msra.mxu0 0.0
    %562 = vmatprep.subr.mxu0 0.0
    %563 = vmatpush1.msra.mxu0 0.0
    %564 = vmatprep.subr.mxu0 0.0
    %565 = vmatpush1.msra.mxu0 0.0
    %566 = vmatprep.subr.mxu0 0.0
    %567 = vmatpush1.msra.mxu0 0.0
    %568 = vmatprep.subr.mxu0 0.0
    %569 = vmatpush1.msra.mxu0 0.0
    %570 = vmatprep.subr.mxu0 0.0
    %571 = vmatpush1.msra.mxu0 0.0
    %572 = vmatprep.subr.mxu0 0.0
    %573 = vmatpush1.msra.mxu0 0.0
    %574 = vmatprep.subr.mxu0 0.0
    %575 = vmatpush1.msra.mxu0 0.0
    %576 = vmatprep.subr.mxu0 0.0
    %577 = vmatpush1.msra.mxu0 0.0
    %578 = vmatprep.subr.mxu0 0.0
    %579 = vmatpush1.msra.mxu0 0.0
    %580 = vmatprep.subr.mxu0 0.0
    %581 = vmatpush1.msra.mxu0 0.0
    %582 = vmatprep.subr.mxu0 0.0
    %583 = vmatpush1.msra.mxu0 0.0
    %584 = vmatprep.subr.mxu0 0.0
    %585 = vmatpush1.msra.mxu0 0.0
    %586 = vmatprep.subr.mxu0 0.0
    %587 = vmatpush1.msra.mxu0 0.0
    %588 = vmatprep.subr.mxu0 0.0
    %589 = vmatpush1.msra.mxu0 0.0
    %590 = vmatprep.subr.mxu0 0.0
    %591 = vmatpush1.msra.mxu0 0.0
    %592 = vmatprep.subr.mxu0 0.0
    %593 = vmatpush1.msra.mxu0 0.0
    %594 = vmatprep.subr.mxu0 0.0
    %595 = vmatpush1.msra.mxu0 0.0
    %596 = vmatprep.subr.mxu0 0.0
    %597 = vmatpush1.msra.mxu0 0.0
    %598 = vmatprep.subr.mxu0 0.0
    %599 = vmatpush1.msra.mxu0 0.0
    %600 = vmatprep.subr.mxu0 0.0
    %601 = vmatpush1.msra.mxu0 0.0
    %602 = vmatprep.subr.mxu0 0.0
    %603 = vmatpush1.msra.mxu0 0.0
    %604 = vmatprep.subr.mxu0 0.0
    %605 = vmatpush1.msra.mxu0 0.0
    %606 = vmatprep.subr.mxu0 0.0
    %607 = vmatpush1.msra.mxu0 0.0
    %608 = vmatprep.subr.mxu0 0.0
    %609 = vmatpush1.msra.mxu0 0.0
    %610 = vmatprep.subr.mxu0 0.0
    %611 = vmatpush1.msra.mxu0 0.0
    %612 = vmatprep.mubr.f32.mxu0 0.0
    %613 = vmatmul.mubr.f32.gmra.mrb[0].mxu0 %v546
    %v614 = vpop.f32.mrb[0].mxu0
    %v615 = vadd.f32 0.0, %v614
    %v616 = vpop.f32.mrb[0].mxu0
    %617 = vdwg.mxu0
    %v618 = vadd.f32 %v118, %v615
    %v619 = vtanh.pop %v618
    %v622 = vunpack.c.l.s4 1966171168
    %v623 = vunpack.c.0.s8 %v622
    %v624 = vlaneseq
    %v625 = vshrl.u32 %v624, 7
    %v626 = vsub.s32 %v623, %v625
    %v627 = vrot.slane %v619, %v626
    %v628 = vcombine.high %v627, %v627
    %v630 = vunpack.c.l.s4 1966171168
    %v631 = vunpack.c.0.s8 %v630
    %v632 = vlaneseq
    %v633 = vshrl.u32 %v632, 7
    %v634 = vsub.s32 %v631, %v633
    %v635 = vrot.slane %v627, %v634
    %v637 = vunpack.c.l.s4 1966171168
    %v638 = vunpack.c.0.s8 %v637
    %v639 = vlaneseq
    %v640 = vshrl.u32 %v639, 7
    %v641 = vsub.s32 %v638, %v640
    %v642 = vrot.slane %v628, %v641
    %645 = vst.msk [vmem:[#allocation2 + $0x4] sm:$0x1] %vm222, %v635
    %646 = vst.msk [vmem:[#allocation2 + $0xc] sm:$0x1] %vm222, %v642
    %v647 = vsel %vm121, %v619, 0
    %649 = vmatprep.subr.mxu0 0.0
    %650 = vmatpush1.msra.mxu0 %v24
    %651 = vmatprep.subr.mxu0 0.0
    %652 = vmatpush1.msra.mxu0 %v25
    %653 = vmatprep.subr.mxu0 0.0
    %654 = vmatpush1.msra.mxu0 %v26
    %655 = vmatprep.subr.mxu0 0.0
    %656 = vmatpush1.msra.mxu0 %v27
    %657 = vmatprep.subr.mxu0 0.0
    %658 = vmatpush1.msra.mxu0 0.0
    %659 = vmatprep.subr.mxu0 0.0
    %660 = vmatpush1.msra.mxu0 0.0
    %661 = vmatprep.subr.mxu0 0.0
    %662 = vmatpush1.msra.mxu0 0.0
    %663 = vmatprep.subr.mxu0 0.0
    %664 = vmatpush1.msra.mxu0 0.0
    %665 = vmatprep.subr.mxu0 0.0
    %666 = vmatpush1.msra.mxu0 0.0
    %667 = vmatprep.subr.mxu0 0.0
    %668 = vmatpush1.msra.mxu0 0.0
    %669 = vmatprep.subr.mxu0 0.0
    %670 = vmatpush1.msra.mxu0 0.0
    %671 = vmatprep.subr.mxu0 0.0
    %672 = vmatpush1.msra.mxu0 0.0
    %673 = vmatprep.subr.mxu0 0.0
    %674 = vmatpush1.msra.mxu0 0.0
    %675 = vmatprep.subr.mxu0 0.0
    %676 = vmatpush1.msra.mxu0 0.0
    %677 = vmatprep.subr.mxu0 0.0
    %678 = vmatpush1.msra.mxu0 0.0
    %679 = vmatprep.subr.mxu0 0.0
    %680 = vmatpush1.msra.mxu0 0.0
    %681 = vmatprep.subr.mxu0 0.0
    %682 = vmatpush1.msra.mxu0 0.0
    %683 = vmatprep.subr.mxu0 0.0
    %684 = vmatpush1.msra.mxu0 0.0
    %685 = vmatprep.subr.mxu0 0.0
    %686 = vmatpush1.msra.mxu0 0.0
    %687 = vmatprep.subr.mxu0 0.0
    %688 = vmatpush1.msra.mxu0 0.0
    %689 = vmatprep.subr.mxu0 0.0
    %690 = vmatpush1.msra.mxu0 0.0
    %691 = vmatprep.subr.mxu0 0.0
    %692 = vmatpush1.msra.mxu0 0.0
    %693 = vmatprep.subr.mxu0 0.0
    %694 = vmatpush1.msra.mxu0 0.0
    %695 = vmatprep.subr.mxu0 0.0
    %696 = vmatpush1.msra.mxu0 0.0
    %697 = vmatprep.subr.mxu0 0.0
    %698 = vmatpush1.msra.mxu0 0.0
    %699 = vmatprep.subr.mxu0 0.0
    %700 = vmatpush1.msra.mxu0 0.0
    %701 = vmatprep.subr.mxu0 0.0
    %702 = vmatpush1.msra.mxu0 0.0
    %703 = vmatprep.subr.mxu0 0.0
    %704 = vmatpush1.msra.mxu0 0.0
    %705 = vmatprep.subr.mxu0 0.0
    %706 = vmatpush1.msra.mxu0 0.0
    %707 = vmatprep.subr.mxu0 0.0
    %708 = vmatpush1.msra.mxu0 0.0
    %709 = vmatprep.subr.mxu0 0.0
    %710 = vmatpush1.msra.mxu0 0.0
    %711 = vmatprep.subr.mxu0 0.0
    %712 = vmatpush1.msra.mxu0 0.0
    %713 = vmatprep.mubr.f32.mxu0 0.0
    %714 = vmatmul.mubr.f32.gmra.mrb[0].mxu0 %v647
    %v715 = vpop.f32.mrb[0].mxu0
    %v716 = vadd.f32 0.0, %v715
    %v717 = vpop.f32.mrb[0].mxu0
    %718 = vdwg.mxu0
    %v720 = vrot.slane %v716, 6
    %v722 = vadd.f32 %v118, %v720
    %v723 = vtanh.pop %v722
    %v726 = vunpack.c.l.s4 1966171168
    %v727 = vunpack.c.0.s8 %v726
    %v728 = vlaneseq
    %v729 = vshrl.u32 %v728, 7
    %v730 = vsub.s32 %v727, %v729
    %v731 = vrot.slane %v723, %v730
    %v732 = vcombine.high %v731, %v731
    %v734 = vunpack.c.l.s4 1966171168
    %v735 = vunpack.c.0.s8 %v734
    %v736 = vlaneseq
    %v737 = vshrl.u32 %v736, 7
    %v738 = vsub.s32 %v735, %v737
    %v739 = vrot.slane %v731, %v738
    %v741 = vunpack.c.l.s4 1966171168
    %v742 = vunpack.c.0.s8 %v741
    %v743 = vlaneseq
    %v744 = vshrl.u32 %v743, 7
    %v745 = vsub.s32 %v742, %v744
    %v746 = vrot.slane %v732, %v745
    %v747 = vcombine.high %v739, %v739
    %v748 = vcombine.high %v746, %v746
    %751 = vst.msk [vmem:[#allocation2 + $0x5] sm:$0x1] %vm222, %v747
    %752 = vst.msk [vmem:[#allocation2 + $0xd] sm:$0x1] %vm222, %v748
    %v753 = vrot.slane %v723, 2
    %v754 = vsel %vm121, %v753, 0
    %756 = vmatprep.subr.mxu0 0.0
    %757 = vmatpush1.msra.mxu0 %v24
    %758 = vmatprep.subr.mxu0 0.0
    %759 = vmatpush1.msra.mxu0 %v25
    %760 = vmatprep.subr.mxu0 0.0
    %761 = vmatpush1.msra.mxu0 %v26
    %762 = vmatprep.subr.mxu0 0.0
    %763 = vmatpush1.msra.mxu0 %v27
    %764 = vmatprep.subr.mxu0 0.0
    %765 = vmatpush1.msra.mxu0 0.0
    %766 = vmatprep.subr.mxu0 0.0
    %767 = vmatpush1.msra.mxu0 0.0
    %768 = vmatprep.subr.mxu0 0.0
    %769 = vmatpush1.msra.mxu0 0.0
    %770 = vmatprep.subr.mxu0 0.0
    %771 = vmatpush1.msra.mxu0 0.0
    %772 = vmatprep.subr.mxu0 0.0
    %773 = vmatpush1.msra.mxu0 0.0
    %774 = vmatprep.subr.mxu0 0.0
    %775 = vmatpush1.msra.mxu0 0.0
    %776 = vmatprep.subr.mxu0 0.0
    %777 = vmatpush1.msra.mxu0 0.0
    %778 = vmatprep.subr.mxu0 0.0
    %779 = vmatpush1.msra.mxu0 0.0
    %780 = vmatprep.subr.mxu0 0.0
    %781 = vmatpush1.msra.mxu0 0.0
    %782 = vmatprep.subr.mxu0 0.0
    %783 = vmatpush1.msra.mxu0 0.0
    %784 = vmatprep.subr.mxu0 0.0
    %785 = vmatpush1.msra.mxu0 0.0
    %786 = vmatprep.subr.mxu0 0.0
    %787 = vmatpush1.msra.mxu0 0.0
    %788 = vmatprep.subr.mxu0 0.0
    %789 = vmatpush1.msra.mxu0 0.0
    %790 = vmatprep.subr.mxu0 0.0
    %791 = vmatpush1.msra.mxu0 0.0
    %792 = vmatprep.subr.mxu0 0.0
    %793 = vmatpush1.msra.mxu0 0.0
    %794 = vmatprep.subr.mxu0 0.0
    %795 = vmatpush1.msra.mxu0 0.0
    %796 = vmatprep.subr.mxu0 0.0
    %797 = vmatpush1.msra.mxu0 0.0
    %798 = vmatprep.subr.mxu0 0.0
    %799 = vmatpush1.msra.mxu0 0.0
    %800 = vmatprep.subr.mxu0 0.0
    %801 = vmatpush1.msra.mxu0 0.0
    %802 = vmatprep.subr.mxu0 0.0
    %803 = vmatpush1.msra.mxu0 0.0
    %804 = vmatprep.subr.mxu0 0.0
    %805 = vmatpush1.msra.mxu0 0.0
    %806 = vmatprep.subr.mxu0 0.0
    %807 = vmatpush1.msra.mxu0 0.0
    %808 = vmatprep.subr.mxu0 0.0
    %809 = vmatpush1.msra.mxu0 0.0
    %810 = vmatprep.subr.mxu0 0.0
    %811 = vmatpush1.msra.mxu0 0.0
    %812 = vmatprep.subr.mxu0 0.0
    %813 = vmatpush1.msra.mxu0 0.0
    %814 = vmatprep.subr.mxu0 0.0
    %815 = vmatpush1.msra.mxu0 0.0
    %816 = vmatprep.subr.mxu0 0.0
    %817 = vmatpush1.msra.mxu0 0.0
    %818 = vmatprep.subr.mxu0 0.0
    %819 = vmatpush1.msra.mxu0 0.0
    %820 = vmatprep.mubr.f32.mxu0 0.0
    %821 = vmatmul.mubr.f32.gmra.mrb[0].mxu0 %v754
    %v822 = vpop.f32.mrb[0].mxu0
    %v823 = vadd.f32 0.0, %v822
    %v824 = vpop.f32.mrb[0].mxu0
    %825 = vdwg.mxu0
    %v827 = vrot.slane %v823, 4
    %v829 = vadd.f32 %v118, %v827
    %v830 = vtanh.pop %v829
    %v832 = vcombine.high %v830, %v830
    %v834 = vunpack.c.l.s4 1966171168
    %v835 = vunpack.c.0.s8 %v834
    %v836 = vlaneseq
    %v837 = vshrl.u32 %v836, 7
    %v838 = vsub.s32 %v835, %v837
    %v839 = vrot.slane %v832, %v838
    %v840 = vcombine.high %v839, %v839
    %v842 = vunpack.c.l.s4 1966171168
    %v843 = vunpack.c.0.s8 %v842
    %v844 = vlaneseq
    %v845 = vshrl.u32 %v844, 7
    %v846 = vsub.s32 %v843, %v845
    %v847 = vrot.slane %v839, %v846
    %v849 = vunpack.c.l.s4 1966171168
    %v850 = vunpack.c.0.s8 %v849
    %v851 = vlaneseq
    %v852 = vshrl.u32 %v851, 7
    %v853 = vsub.s32 %v850, %v852
    %v854 = vrot.slane %v840, %v853
    %857 = vst.msk [vmem:[#allocation2 + $0x6] sm:$0x1] %vm222, %v847
    %858 = vst.msk [vmem:[#allocation2 + $0xe] sm:$0x1] %vm222, %v854
    %v859 = vrot.slane %v830, 4
    %v860 = vsel %vm121, %v859, 0
    %862 = vmatprep.subr.mxu0 0.0
    %863 = vmatpush1.msra.mxu0 %v24
    %864 = vmatprep.subr.mxu0 0.0
    %865 = vmatpush1.msra.mxu0 %v25
    %866 = vmatprep.subr.mxu0 0.0
    %867 = vmatpush1.msra.mxu0 %v26
    %868 = vmatprep.subr.mxu0 0.0
    %869 = vmatpush1.msra.mxu0 %v27
    %870 = vmatprep.subr.mxu0 0.0
    %871 = vmatpush1.msra.mxu0 0.0
    %872 = vmatprep.subr.mxu0 0.0
    %873 = vmatpush1.msra.mxu0 0.0
    %874 = vmatprep.subr.mxu0 0.0
    %875 = vmatpush1.msra.mxu0 0.0
    %876 = vmatprep.subr.mxu0 0.0
    %877 = vmatpush1.msra.mxu0 0.0
    %878 = vmatprep.subr.mxu0 0.0
    %879 = vmatpush1.msra.mxu0 0.0
    %880 = vmatprep.subr.mxu0 0.0
    %881 = vmatpush1.msra.mxu0 0.0
    %882 = vmatprep.subr.mxu0 0.0
    %883 = vmatpush1.msra.mxu0 0.0
    %884 = vmatprep.subr.mxu0 0.0
    %885 = vmatpush1.msra.mxu0 0.0
    %886 = vmatprep.subr.mxu0 0.0
    %887 = vmatpush1.msra.mxu0 0.0
    %888 = vmatprep.subr.mxu0 0.0
    %889 = vmatpush1.msra.mxu0 0.0
    %890 = vmatprep.subr.mxu0 0.0
    %891 = vmatpush1.msra.mxu0 0.0
    %892 = vmatprep.subr.mxu0 0.0
    %893 = vmatpush1.msra.mxu0 0.0
    %894 = vmatprep.subr.mxu0 0.0
    %895 = vmatpush1.msra.mxu0 0.0
    %896 = vmatprep.subr.mxu0 0.0
    %897 = vmatpush1.msra.mxu0 0.0
    %898 = vmatprep.subr.mxu0 0.0
    %899 = vmatpush1.msra.mxu0 0.0
    %900 = vmatprep.subr.mxu0 0.0
    %901 = vmatpush1.msra.mxu0 0.0
    %902 = vmatprep.subr.mxu0 0.0
    %903 = vmatpush1.msra.mxu0 0.0
    %904 = vmatprep.subr.mxu0 0.0
    %905 = vmatpush1.msra.mxu0 0.0
    %906 = vmatprep.subr.mxu0 0.0
    %907 = vmatpush1.msra.mxu0 0.0
    %908 = vmatprep.subr.mxu0 0.0
    %909 = vmatpush1.msra.mxu0 0.0
    %910 = vmatprep.subr.mxu0 0.0
    %911 = vmatpush1.msra.mxu0 0.0
    %912 = vmatprep.subr.mxu0 0.0
    %913 = vmatpush1.msra.mxu0 0.0
    %914 = vmatprep.subr.mxu0 0.0
    %915 = vmatpush1.msra.mxu0 0.0
    %916 = vmatprep.subr.mxu0 0.0
    %917 = vmatpush1.msra.mxu0 0.0
    %918 = vmatprep.subr.mxu0 0.0
    %919 = vmatpush1.msra.mxu0 0.0
    %920 = vmatprep.subr.mxu0 0.0
    %921 = vmatpush1.msra.mxu0 0.0
    %922 = vmatprep.subr.mxu0 0.0
    %923 = vmatpush1.msra.mxu0 0.0
    %924 = vmatprep.subr.mxu0 0.0
    %925 = vmatpush1.msra.mxu0 0.0
    %926 = vmatprep.mubr.f32.mxu0 0.0
    %927 = vmatmul.mubr.f32.gmra.mrb[0].mxu0 %v860
    %v928 = vpop.f32.mrb[0].mxu0
    %v929 = vadd.f32 0.0, %v928
    %v930 = vpop.f32.mrb[0].mxu0
    %931 = vdwg.mxu0
    %v933 = vrot.slane %v929, 2
    %v935 = vadd.f32 %v118, %v933
    %v936 = vtanh.pop %v935
    %v938 = vcombine.high %v936, %v936
    %v940 = vunpack.c.l.s4 1966171168
    %v941 = vunpack.c.0.s8 %v940
    %v942 = vlaneseq
    %v943 = vshrl.u32 %v942, 7
    %v944 = vsub.s32 %v941, %v943
    %v945 = vrot.slane %v938, %v944
    %v946 = vcombine.high %v945, %v945
    %v948 = vunpack.c.l.s4 1966171168
    %v949 = vunpack.c.0.s8 %v948
    %v950 = vlaneseq
    %v951 = vshrl.u32 %v950, 7
    %v952 = vsub.s32 %v949, %v951
    %v953 = vrot.slane %v945, %v952
    %v955 = vunpack.c.l.s4 1966171168
    %v956 = vunpack.c.0.s8 %v955
    %v957 = vlaneseq
    %v958 = vshrl.u32 %v957, 7
    %v959 = vsub.s32 %v956, %v958
    %v960 = vrot.slane %v946, %v959
    %v961 = vcombine.high %v953, %v953
    %v962 = vcombine.high %v960, %v960
    %965 = vst.msk [vmem:[#allocation2 + $0x7] sm:$0x1] %vm222, %v961
    %966 = vst.msk [vmem:[#allocation2 + $0xf] sm:$0x1] %vm222, %v962
    %v967 = vld [vmem:[#allocation2] sm:$0xff]
    %v968 = vld [vmem:[#allocation2 + $0x8] sm:$0xff]
    %v969 = vld [vmem:[%s4] sm:$0xff]
    %v970 = vld [vmem:[%s4 + $0x8] sm:$0xff]
    %v971 = vld [vmem:[%s4 + $0x10] sm:$0xff]
    %v972 = vld [vmem:[%s4 + $0x18] sm:$0xff]
    %v973 = vld [vmem:[%s5] sm:$0x1]
    %v975 = vlaneseq
    %v976 = vshrl.u32 %v975, 7
    %v977 = vsub.s32 0, %v976
    %v978 = vrot.slane %v973, %v977
    %v981 = vsel %vm121, %v967, 0
    %v984 = vsel %vm121, %v968, 0
    %986 = vmatprep.subr.mxu0 0.0
    %987 = vmatpush1.msra.mxu0 %v969
    %988 = vmatprep.subr.mxu0 0.0
    %989 = vmatpush1.msra.mxu0 %v970
    %990 = vmatprep.subr.mxu0 0.0
    %991 = vmatpush1.msra.mxu0 %v971
    %992 = vmatprep.subr.mxu0 0.0
    %993 = vmatpush1.msra.mxu0 %v972
    %994 = vmatprep.subr.mxu0 0.0
    %995 = vmatpush1.msra.mxu0 0.0
    %996 = vmatprep.subr.mxu0 0.0
    %997 = vmatpush1.msra.mxu0 0.0
    %998 = vmatprep.subr.mxu0 0.0
    %999 = vmatpush1.msra.mxu0 0.0
    %1000 = vmatprep.subr.mxu0 0.0
    %1001 = vmatpush1.msra.mxu0 0.0
    %1002 = vmatprep.subr.mxu0 0.0
    %1003 = vmatpush1.msra.mxu0 0.0
    %1004 = vmatprep.subr.mxu0 0.0
    %1005 = vmatpush1.msra.mxu0 0.0
    %1006 = vmatprep.subr.mxu0 0.0
    %1007 = vmatpush1.msra.mxu0 0.0
    %1008 = vmatprep.subr.mxu0 0.0
    %1009 = vmatpush1.msra.mxu0 0.0
    %1010 = vmatprep.subr.mxu0 0.0
    %1011 = vmatpush1.msra.mxu0 0.0
    %1012 = vmatprep.subr.mxu0 0.0
    %1013 = vmatpush1.msra.mxu0 0.0
    %1014 = vmatprep.subr.mxu0 0.0
    %1015 = vmatpush1.msra.mxu0 0.0
    %1016 = vmatprep.subr.mxu0 0.0
    %1017 = vmatpush1.msra.mxu0 0.0
    %1018 = vmatprep.subr.mxu0 0.0
    %1019 = vmatpush1.msra.mxu0 0.0
    %1020 = vmatprep.subr.mxu0 0.0
    %1021 = vmatpush1.msra.mxu0 0.0
    %1022 = vmatprep.subr.mxu0 0.0
    %1023 = vmatpush1.msra.mxu0 0.0
    %1024 = vmatprep.subr.mxu0 0.0
    %1025 = vmatpush1.msra.mxu0 0.0
    %1026 = vmatprep.subr.mxu0 0.0
    %1027 = vmatpush1.msra.mxu0 0.0
    %1028 = vmatprep.subr.mxu0 0.0
    %1029 = vmatpush1.msra.mxu0 0.0
    %1030 = vmatprep.subr.mxu0 0.0
    %1031 = vmatpush1.msra.mxu0 0.0
    %1032 = vmatprep.subr.mxu0 0.0
    %1033 = vmatpush1.msra.mxu0 0.0
    %1034 = vmatprep.subr.mxu0 0.0
    %1035 = vmatpush1.msra.mxu0 0.0
    %1036 = vmatprep.subr.mxu0 0.0
    %1037 = vmatpush1.msra.mxu0 0.0
    %1038 = vmatprep.subr.mxu0 0.0
    %1039 = vmatpush1.msra.mxu0 0.0
    %1040 = vmatprep.subr.mxu0 0.0
    %1041 = vmatpush1.msra.mxu0 0.0
    %1042 = vmatprep.subr.mxu0 0.0
    %1043 = vmatpush1.msra.mxu0 0.0
    %1044 = vmatprep.subr.mxu0 0.0
    %1045 = vmatpush1.msra.mxu0 0.0
    %1046 = vmatprep.subr.mxu0 0.0
    %1047 = vmatpush1.msra.mxu0 0.0
    %1048 = vmatprep.subr.mxu0 0.0
    %1049 = vmatpush1.msra.mxu0 0.0
    %1050 = vmatprep.mubr.f32.mxu0 0.0
    %1051 = vmatmul.mubr.f32.gmra.mrb[0].mxu0 %v981
    %v1052 = vpop.f32.mrb[0].mxu0
    %v1053 = vadd.f32 %v978, %v1052
    %v1054 = vpop.f32.mrb[0].mxu0
    %1055 = vmatprep.mubr.f32.mxu0 0.0
    %1056 = vmatmul.mubr.f32.gmra.mrb[0].mxu0 %v984
    %v1057 = vpop.f32.mrb[0].mxu0
    %v1058 = vadd.f32 %v978, %v1057
    %v1059 = vpop.f32.mrb[0].mxu0
    %1060 = vdwg.mxu0
    %1061 = vst.msk [vmem:[#allocation3] sm:$0xff] %vm39, %v1053
    %1062 = vst.msk [vmem:[#allocation3 + $0x8] sm:$0xff] %vm39, %v1058
    // Predicated region
    $region26: #{harmony_rnn_forward.1} parent=1 // pred_check
      _
    $region27: #{harmony_rnn_forward.1} parent=1 // pred_check_branch
      %1064 = sbr.rel (0) target = $region29
    $region28: #{harmony_rnn_forward.1} parent=1 // pred_region
      %s1066 = ssub.s32 256, 256
      %1067 = vsyncadd [#allocation4], %s1066
      %s1068 = sshll.u32 [#allocation3], 4
      %s1069 = int_to_ptr.vmem [resolvable:$true] %s1068
      %1074 = dma.vmem_to_hbm [thread:$0]  %s1069, 256, %s6, [#allocation4], 128, 128, 8
    $region29: #{harmony_rnn_forward.1} parent=1 // pred_fallthru
      _
    // Predicated region
    $region30: #{harmony_rnn_forward.1} parent=1 // pred_check
      _
    $region31: #{harmony_rnn_forward.1} parent=1 // pred_check_branch
      %1076 = sbr.rel (0) target = $region33
    $region32: #{harmony_rnn_forward.1} parent=1 // pred_region
      %1077 = dma.done [#allocation4], 256
    $region33: #{harmony_rnn_forward.1} parent=1 // pred_fallthru
      _
    %1078 = vsyncpa [#allocation4], 1

</llo_original>
